<compile_context>
chip_gen: v5e
topology: v5e:2x2
jax: 0.10.0
libtpu: 0.0.40
codegen_flags: <defaults>
</compile_context>

<pallas_src>
import math
import jax
import jax.numpy as jnp
from jax.experimental import pallas as pl
from jax.experimental.pallas import tpu as pltpu


# --------------------------------------------------------------------------
# Kernel
# --------------------------------------------------------------------------
def _noisy_linear_kernel(x_ref, wmu_ref, wsig_ref, eps_in_ref, eps_out_ref,
                         bias_ref, o_ref):
    k = pl.program_id(1)

    @pl.when(k == 0)
    def _init():
        o_ref[...] = jnp.zeros_like(o_ref)

    x = x_ref[...]                                   # (batch_p, tk)

    # mu contribution: (batch, tk) @ (tk, tn) -> (batch, tn), f32 accumulate.
    mu = jax.lax.dot_general(
        x, wmu_ref[...],
        dimension_numbers=(((1,), (0,)), ((), ())),
        preferred_element_type=jnp.float32)

    # sigma contribution with the noise kept factorized:
    #   ((x * eps_in) @ Wsig_t) * eps_out
    xs = x * eps_in_ref[...]                         # (batch, tk) * (1, tk)
    sg = jax.lax.dot_general(
        xs, wsig_ref[...],
        dimension_numbers=(((1,), (0,)), ((), ())),
        preferred_element_type=jnp.float32)

    o_ref[...] += mu + sg * eps_out_ref[...]         # eps_out is (1, tn)

    @pl.when(k == pl.num_programs(1) - 1)
    def _finalize():
        o_ref[...] += bias_ref[...]                  # fused (1, tn) bias row


# --------------------------------------------------------------------------
# Tiling / padding helpers
# --------------------------------------------------------------------------
def _round_up(v, m):
    return (v + m - 1) // m * m


def _choose_tile(dim, max_tile, *, prefer_split=False):
    """Pad `dim` to a multiple of 128 and pick the largest 128-multiple tile
    (<= max_tile) that divides the padded dim exactly (no zero streaming).
    With prefer_split, cap the tile so at least two tiles exist (v7x 2 TCs)."""
    dim_p = _round_up(dim, 128)
    cap = min(max_tile, dim_p)
    if prefer_split and dim_p >= 256:
        cap = min(cap, max(128, (dim_p // 2) // 128 * 128))
    tile = 128
    for t in range(cap, 127, -128):
        if dim_p % t == 0:
            tile = t
            break
    return dim_p, tile


def _pad_to(arr, shape):
    if arr.shape == tuple(shape):
        return arr
    return jnp.zeros(shape, arr.dtype).at[
        tuple(slice(0, s) for s in arr.shape)].set(arr)


# --------------------------------------------------------------------------
# One-time parameter preparation (do this at init / reset_noise, NOT per call)
# --------------------------------------------------------------------------
def prepare_noisy_linear(weight_mu, weight_sigma, eps_out, eps_in,
                         bias_mu, bias_sigma, bias_epsilon,
                         *, max_tn=512, max_tk=1024, weights_dtype=None):
    """Pad/transposed/fuse the module parameters once.

    weights_dtype=jnp.bfloat16 enables bf16 weight/activation streaming
    (f32 MXU accumulation) -- an intentional precision tradeoff."""
    out_features, in_features = weight_mu.shape
    in_p, tk = _choose_tile(in_features, max_tk)
    out_p, tn = _choose_tile(out_features, max_tn, prefer_split=True)

    wdtype = weights_dtype if weights_dtype is not None else weight_mu.dtype

    # (out, in) -> (in, out): plain x @ W layout, no in-kernel transpose.
    wmu_t = _pad_to(weight_mu.T.astype(wdtype), (in_p, out_p))
    wsig_t = _pad_to(weight_sigma.T.astype(wdtype), (in_p, out_p))
    eps_in_row = _pad_to(eps_in.astype(wdtype).reshape(1, -1), (1, in_p))
    eps_out_row = _pad_to(eps_out.astype(jnp.float32).reshape(1, -1), (1, out_p))
    bias_row = _pad_to((bias_mu + bias_sigma * bias_epsilon)
                       .astype(jnp.float32).reshape(1, -1), (1, out_p))

    return dict(wmu_t=wmu_t, wsig_t=wsig_t, eps_in_row=eps_in_row,
                eps_out_row=eps_out_row, bias_row=bias_row,
                in_features=in_features, out_features=out_features,
                in_p=in_p, out_p=out_p, tk=tk, tn=tn, wdtype=wdtype)


# --------------------------------------------------------------------------
# Forward pass
# --------------------------------------------------------------------------
def noisy_linear_apply(x, prep):
    """Pallas TPU forward pass using prepared parameters."""
    batch, in_features = x.shape
    assert in_features == prep["in_features"]
    in_p, out_p = prep["in_p"], prep["out_p"]
    tk, tn = prep["tk"], prep["tn"]

    batch_p = _round_up(batch, 8)
    xp = _pad_to(x.astype(prep["wdtype"]), (batch_p, in_p))

    grid = (out_p // tn, in_p // tk)   # (N tiles "parallel", K tiles "arbitrary")
    itemsize = jnp.dtype(prep["wdtype"]).itemsize
    cost = pl.CostEstimate(
        flops=4 * batch_p * in_p * out_p,               # two MXU matmuls
        transcendentals=0,
        bytes_accessed=(2 * in_p * out_p + batch_p * in_p) * itemsize
                       + batch_p * out_p * 4)

    grid_spec = pltpu.PrefetchScalarGridSpec(
        num_scalar_prefetch=0,
        grid=grid,
        in_specs=[
            pl.BlockSpec((batch_p, tk), lambda j, k: (0, k)),   # x
            pl.BlockSpec((tk, tn),      lambda j, k: (k, j)),   # W_mu^T
            pl.BlockSpec((tk, tn),      lambda j, k: (k, j)),   # W_sigma^T
            pl.BlockSpec((1, tk),       lambda j, k: (0, k)),   # eps_in row
            pl.BlockSpec((1, tn),       lambda j, k: (0, j)),   # eps_out row
            pl.BlockSpec((1, tn),       lambda j, k: (0, j)),   # fused bias row
        ],
        out_specs=pl.BlockSpec((batch_p, tn), lambda j, k: (0, j)),
    )

    out_padded = pl.pallas_call(
        _noisy_linear_kernel,
        out_shape=jax.ShapeDtypeStruct((batch_p, out_p), jnp.float32),
        grid_spec=grid_spec,
        compiler_params=pltpu.CompilerParams(
            dimension_semantics=("parallel", "arbitrary")),
        cost_estimate=cost,
    )(xp, prep["wmu_t"], prep["wsig_t"], prep["eps_in_row"],
      prep["eps_out_row"], prep["bias_row"])

    return out_padded[:batch, :prep["out_features"]]


def noisy_linear(x, weight_mu, weight_sigma, eps_out, eps_in,
                 bias_mu, bias_sigma, bias_epsilon, **kwargs):
    """Convenience wrapper (prepares per call). For repeated forwards, call
    prepare_noisy_linear once and reuse the result with noisy_linear_apply."""
    prep = prepare_noisy_linear(weight_mu, weight_sigma, eps_out, eps_in,
                                bias_mu, bias_sigma, bias_epsilon, **kwargs)
    return noisy_linear_apply(x, prep)


# --------------------------------------------------------------------------
# Module init / noise-reset glue (plain JAX, mirrors the PyTorch module)
# --------------------------------------------------------------------------
def _get_noise(key, size):
    """Replicates FactorizedNoisyLinear._get_noise: sign(n) * sqrt(|n|)."""
    noise = jax.random.normal(key, (size,), dtype=jnp.float32)
    return jnp.sign(noise) * jnp.sqrt(jnp.abs(noise))


def init_factorized_noisy_linear(key, in_features, out_features, sigma_0):
    """Parameter + factorized-noise init mirroring __init__ / reset_noise.

    Returns (weight_mu, weight_sigma, eps_out, eps_in, bias_mu, bias_sigma,
    bias_epsilon).  weight_epsilon of the module == outer(eps_out, eps_in)."""
    k_wmu, k_bmu, k_ein, k_eout = jax.random.split(key, 4)
    scale = 1.0 / math.sqrt(in_features)

    weight_mu = jax.random.uniform(
        k_wmu, (out_features, in_features), jnp.float32, -scale, scale)
    bias_mu = jax.random.uniform(
        k_bmu, (out_features,), jnp.float32, -scale, scale)
    weight_sigma = jnp.full((out_features, in_features), sigma_0 * scale,
                            dtype=jnp.float32)
    bias_sigma = jnp.full((out_features,), sigma_0 * scale, dtype=jnp.float32)

    eps_in = _get_noise(k_ein, in_features)
    eps_out = _get_noise(k_eout, out_features)
    bias_epsilon = eps_out

    return (weight_mu, weight_sigma, eps_out, eps_in,
            bias_mu, bias_sigma, bias_epsilon)


def _reference(x, weight_mu, weight_sigma, eps_out, eps_in,
               bias_mu, bias_sigma, bias_epsilon):
    w = weight_mu + weight_sigma * jnp.outer(eps_out, eps_in)
    b = bias_mu + bias_sigma * bias_epsilon
    return x @ w.T + b


# --------------------------------------------------------------------------
if __name__ == "__main__":
    key = jax.random.PRNGKey(0)
    sigma_0 = 0.5
    k1p, k1x, k2p, k2x, k3p, k3x = jax.random.split(key, 6)

    # --- Case 1: the module's small demo shapes (single tile after padding) ---
    batch, in_features, out_features = 8, 32, 32
    params = init_factorized_noisy_linear(k1p, in_features, out_features, sigma_0)
    x = jax.random.normal(k1x, (batch, in_features), dtype=jnp.float32)
    prep = prepare_noisy_linear(*params)
    out = jax.block_until_ready(noisy_linear_apply(x, prep))
    ref = _reference(x, *params)
    assert out.shape == (batch, out_features)
    assert jnp.allclose(out, ref, atol=1e-4, rtol=1e-4)

    # --- Case 2: non-tile-multiple dims -> exact-divisor tiles (tk=640, tn=128),
    #     multi-tile "parallel" N axis ---
    batch2, in2, out2 = 4, 640, 384
    params2 = init_factorized_noisy_linear(k2p, in2, out2, sigma_0)
    x2 = jax.random.normal(k2x, (batch2, in2), dtype=jnp.float32)
    prep2 = prepare_noisy_linear(*params2)
    out2_arr = jax.block_until_ready(noisy_linear_apply(x2, prep2))
    ref2 = _reference(x2, *params2)
    assert out2_arr.shape == (batch2, out2)
    assert jnp.allclose(out2_arr, ref2, atol=1e-3, rtol=1e-3)

    # --- Case 3: multi-K reduction + multi-N tiles (small max tiles to force
    #     a (2, 2) grid), plus optional bf16 weight-streaming path ---
    batch3, in3, out3 = 8, 512, 256
    params3 = init_factorized_noisy_linear(k3p, in3, out3, sigma_0)
    x3 = jax.random.normal(k3x, (batch3, in3), dtype=jnp.float32)
    prep3 = prepare_noisy_linear(*params3, max_tn=128, max_tk=256)
    out3_arr = jax.block_until_ready(noisy_linear_apply(x3, prep3))
    ref3 = _reference(x3, *params3)
    assert out3_arr.shape == (batch3, out3)
    assert jnp.allclose(out3_arr, ref3, atol=1e-3, rtol=1e-3)

    prep3_bf16 = prepare_noisy_linear(*params3, weights_dtype=jnp.bfloat16)
    out3_bf16 = jax.block_until_ready(noisy_linear_apply(x3, prep3_bf16))
    assert jnp.allclose(out3_bf16, ref3, atol=5e-2, rtol=5e-2)

    print("KERNEL_OK")
</pallas_src>

<mosaic_0001>
module attributes {stable_mosaic.version = 11 : i64} {
  func.func @_noisy_linear_kernel(%arg0: i32, %arg1: i32, %arg2: memref<8x128xf32, #tpu.memory_space<vmem>>, %arg3: memref<128x128xf32, #tpu.memory_space<vmem>>, %arg4: memref<128x128xf32, #tpu.memory_space<vmem>>, %arg5: memref<1x128xf32, #tpu.memory_space<vmem>>, %arg6: memref<1x128xf32, #tpu.memory_space<vmem>>, %arg7: memref<1x128xf32, #tpu.memory_space<vmem>>, %arg8: memref<8x128xf32, #tpu.memory_space<vmem>>) attributes {dimension_semantics = [#tpu.dimension_semantics<parallel>, #tpu.dimension_semantics<arbitrary>], iteration_bounds = array<i64: 1, 1>, scalar_prefetch = 0 : i64, scratch_operands = 0 : i64, tpu.core_type = #tpu.core_type<tc>, window_params = [{transform_indices = @transform_0, window_bounds = array<i64: 8, 128>}, {transform_indices = @transform_1, window_bounds = array<i64: 128, 128>}, {transform_indices = @transform_2, window_bounds = array<i64: 128, 128>}, {transform_indices = @transform_3, window_bounds = array<i64: 1, 128>}, {transform_indices = @transform_4, window_bounds = array<i64: 1, 128>}, {transform_indices = @transform_5, window_bounds = array<i64: 1, 128>}, {transform_indices = @transform_6, window_bounds = array<i64: 8, 128>}]} {
    %c0_i32 = arith.constant 0 : i32
    %0 = arith.cmpi eq, %arg1, %c0_i32 : i32
    %1 = arith.extui %0 : i1 to i32
    %c0_i32_0 = arith.constant 0 : i32
    %2 = arith.cmpi ne, %1, %c0_i32_0 : i32
    scf.if %2 {
      %cst_17 = arith.constant 0.000000e+00 : f32
      %21 = vector.broadcast %cst_17 : f32 to vector<8x128xf32>
      %c0_18 = arith.constant 0 : index
      %c0_19 = arith.constant 0 : index
      %22 = vector.load %arg8[%c0_18, %c0_19] : memref<8x128xf32, #tpu.memory_space<vmem>>, vector<8x128xf32>
      tpu.vector_store %arg8[%c0_18, %c0_19], %21 {strides = array<i32>} : memref<8x128xf32, #tpu.memory_space<vmem>>, vector<8x128xf32>,
    } else {
    }
    %c0 = arith.constant 0 : index
    %c0_1 = arith.constant 0 : index
    %3 = vector.load %arg2[%c0, %c0_1] : memref<8x128xf32, #tpu.memory_space<vmem>>, vector<8x128xf32>
    %c0_2 = arith.constant 0 : index
    %c0_3 = arith.constant 0 : index
    %4 = vector.load %arg3[%c0_2, %c0_3] : memref<128x128xf32, #tpu.memory_space<vmem>>, vector<128x128xf32>
    %cst = arith.constant dense<0.000000e+00> : vector<8x128xf32>
    %5 = tpu.matmul %3, %4, %cst {dimension_numbers = #tpu.dot_dimension_numbers<[1], [0], [0], [1], [0, 0, 1, 1], [], []>} : vector<8x128xf32>, vector<128x128xf32>, vector<8x128xf32> -> vector<8x128xf32>
    %c0_4 = arith.constant 0 : index
    %c0_5 = arith.constant 0 : index
    %6 = vector.load %arg5[%c0_4, %c0_5] : memref<1x128xf32, #tpu.memory_space<vmem>>, vector<1x128xf32>
    %7 = vector.broadcast %6 : vector<1x128xf32> to vector<8x128xf32>
    %8 = arith.mulf %3, %7 : vector<8x128xf32>
    %c0_6 = arith.constant 0 : index
    %c0_7 = arith.constant 0 : index
    %9 = vector.load %arg4[%c0_6, %c0_7] : memref<128x128xf32, #tpu.memory_space<vmem>>, vector<128x128xf32>
    %cst_8 = arith.constant dense<0.000000e+00> : vector<8x128xf32>
    %10 = tpu.matmul %8, %9, %cst_8 {dimension_numbers = #tpu.dot_dimension_numbers<[1], [0], [0], [1], [0, 0, 1, 1], [], []>} : vector<8x128xf32>, vector<128x128xf32>, vector<8x128xf32> -> vector<8x128xf32>
    %c0_9 = arith.constant 0 : index
    %c0_10 = arith.constant 0 : index
    %11 = vector.load %arg8[%c0_9, %c0_10] : memref<8x128xf32, #tpu.memory_space<vmem>>, vector<8x128xf32>
    %c0_11 = arith.constant 0 : index
    %c0_12 = arith.constant 0 : index
    %12 = vector.load %arg6[%c0_11, %c0_12] : memref<1x128xf32, #tpu.memory_space<vmem>>, vector<1x128xf32>
    %13 = vector.broadcast %12 : vector<1x128xf32> to vector<8x128xf32>
    %14 = arith.mulf %10, %13 : vector<8x128xf32>
    %15 = arith.addf %5, %14 : vector<8x128xf32>
    %16 = arith.addf %11, %15 : vector<8x128xf32>
    %c0_13 = arith.constant 0 : index
    %c0_14 = arith.constant 0 : index
    %17 = vector.load %arg8[%c0_13, %c0_14] : memref<8x128xf32, #tpu.memory_space<vmem>>, vector<8x128xf32>
    tpu.vector_store %arg8[%c0_13, %c0_14], %16 {strides = array<i32>} : memref<8x128xf32, #tpu.memory_space<vmem>>, vector<8x128xf32>,
    %c0_i32_15 = arith.constant 0 : i32
    %18 = arith.cmpi eq, %arg1, %c0_i32_15 : i32
    %19 = arith.extui %18 : i1 to i32
    %c0_i32_16 = arith.constant 0 : i32
    %20 = arith.cmpi ne, %19, %c0_i32_16 : i32
    scf.if %20 {
      %c0_17 = arith.constant 0 : index
      %c0_18 = arith.constant 0 : index
      %21 = vector.load %arg8[%c0_17, %c0_18] : memref<8x128xf32, #tpu.memory_space<vmem>>, vector<8x128xf32>
      %c0_19 = arith.constant 0 : index
      %c0_20 = arith.constant 0 : index
      %22 = vector.load %arg7[%c0_19, %c0_20] : memref<1x128xf32, #tpu.memory_space<vmem>>, vector<1x128xf32>
      %23 = vector.broadcast %22 : vector<1x128xf32> to vector<8x128xf32>
      %24 = arith.addf %21, %23 : vector<8x128xf32>
      %c0_21 = arith.constant 0 : index
      %c0_22 = arith.constant 0 : index
      %25 = vector.load %arg8[%c0_21, %c0_22] : memref<8x128xf32, #tpu.memory_space<vmem>>, vector<8x128xf32>
      tpu.vector_store %arg8[%c0_21, %c0_22], %24 {strides = array<i32>} : memref<8x128xf32, #tpu.memory_space<vmem>>, vector<8x128xf32>,
    } else {
    }
    return
  }
  func.func @transform_0(%arg0: i32, %arg1: i32) -> (i32, i32) {
    %c0_i32 = arith.constant 0 : i32
    %c0_i32_0 = arith.constant 0 : i32
    return %c0_i32, %arg1 : i32, i32
  }
  func.func @transform_1(%arg0: i32, %arg1: i32) -> (i32, i32) {
    %c0_i32 = arith.constant 0 : i32
    return %arg1, %arg0 : i32, i32
  }
  func.func @transform_2(%arg0: i32, %arg1: i32) -> (i32, i32) {
    %c0_i32 = arith.constant 0 : i32
    return %arg1, %arg0 : i32, i32
  }
  func.func @transform_3(%arg0: i32, %arg1: i32) -> (i32, i32) {
    %c0_i32 = arith.constant 0 : i32
    %c0_i32_0 = arith.constant 0 : i32
    return %c0_i32, %arg1 : i32, i32
  }
  func.func @transform_4(%arg0: i32, %arg1: i32) -> (i32, i32) {
    %c0_i32 = arith.constant 0 : i32
    %c0_i32_0 = arith.constant 0 : i32
    return %c0_i32, %arg0 : i32, i32
  }
  func.func @transform_5(%arg0: i32, %arg1: i32) -> (i32, i32) {
    %c0_i32 = arith.constant 0 : i32
    %c0_i32_0 = arith.constant 0 : i32
    return %c0_i32, %arg0 : i32, i32
  }
  func.func @transform_6(%arg0: i32, %arg1: i32) -> (i32, i32) {
    %c0_i32 = arith.constant 0 : i32
    %c0_i32_0 = arith.constant 0 : i32
    return %c0_i32, %arg0 : i32, i32
  }
}

</mosaic_0001>

<llo_original>
// kernel: tpu_custom_call.1
$region0: #{tpu_custom_call.1}
  #allocation0 [shape = 'u32[]', space=smem, size = 0x4, offset = 0x4, fixed_abs, tag = 'smem constant byte address 0x4 - core index']
  #allocation1 [shape = 'u32[72,128]{1,0:T(1,128)}', space=vmem, size = 0x9000, scoped, tag = 'internal scratch']
  %s0 = inlined_call_operand.hbm [shape: f32[8,128], index: 0, kind: input, shape index: {}]
  %s1 = inlined_call_operand.hbm [shape: f32[128,128], index: 1, kind: input, shape index: {}]
  %s2 = inlined_call_operand.hbm [shape: f32[128,128], index: 2, kind: input, shape index: {}]
  %s3 = inlined_call_operand.vmem [shape: f32[1,128], index: 3, kind: input, shape index: {}]
  %s4 = inlined_call_operand.vmem [shape: f32[1,128], index: 4, kind: input, shape index: {}]
  %s5 = inlined_call_operand.vmem [shape: f32[1,128], index: 5, kind: input, shape index: {}]
  %s6 = inlined_call_operand.hbm [shape: f32[8,128], index: 6, kind: output, shape index: {}]
  %s7 = sld [smem:[#allocation0]]
  $region54: #{tpu_custom_call.1} parent=0
    _
  %s9 = ssub.s32 1, %s7
  %s10 = scalar_select 0, %s9, %s7
  $region1: #{tpu_custom_call.1} parent=0
    #allocation2 [shape = 'u8[4096]{0}', space=vmem, size = 0x1000, scoped, tag = 'input window, operand 0, single buffered']
    #allocation3 [shape = 's32[1]{0}', space=sflag, size = 0x4, scoped, tag = 'scoped memory for tpu_custom_call.1']
    #allocation4 [shape = 's32[1]{0}', space=sflag, size = 0x4, scoped, tag = 'scoped memory for tpu_custom_call.1']
    #allocation5 [shape = 'u8[65536]{0}', space=vmem, size = 0x10000, scoped, tag = 'input window, operand 1, single buffered']
    #allocation6 [shape = 's32[1]{0}', space=sflag, size = 0x4, scoped, tag = 'scoped memory for tpu_custom_call.1']
    #allocation7 [shape = 'u8[65536]{0}', space=vmem, size = 0x10000, scoped, tag = 'input window, operand 2, single buffered']
    #allocation8 [shape = 'u8[4096]{0}', space=vmem, size = 0x1000, scoped, tag = 'output window, operand 0, single buffered']
    %11 = vsyncpa [#allocation3], 0
    %12 = vsyncpa [#allocation6], 0
    %13 = vsyncpa [#allocation4], 0
    // Predicated region
    $region2: #{tpu_custom_call.1} parent=1 // pred_check
      _
    $region3: #{tpu_custom_call.1} parent=1 // pred_check_branch
      %15 = sbr.rel (0) target = $region5
    $region4: #{tpu_custom_call.1} parent=1 // pred_region
      %17 = vsyncadd [#allocation3], 0
      %s19 = sshll.u32 %s0, 4
      %s20 = int_to_ptr.hbm [resolvable:$true] %s19
      %s21 = sshll.u32 [#allocation2], 4
      %s22 = int_to_ptr.vmem [resolvable:$true] %s21
      %24 = dma.hbm_to_vmem [thread:$0]  %s20, 128, %s22, [#allocation3]
    $region5: #{tpu_custom_call.1} parent=1 // pred_fallthru
      _
    // Predicated region
    $region6: #{tpu_custom_call.1} parent=1 // pred_check
      _
    $region7: #{tpu_custom_call.1} parent=1 // pred_check_branch
      %26 = sbr.rel (0) target = $region9
    $region8: #{tpu_custom_call.1} parent=1 // pred_region
      %28 = vsyncadd [#allocation6], 0
      %s29 = sshll.u32 %s1, 4
      %s30 = int_to_ptr.hbm [resolvable:$true] %s29
      %s31 = sshll.u32 [#allocation5], 4
      %s32 = int_to_ptr.vmem [resolvable:$true] %s31
      %37 = dma.hbm_to_vmem [thread:$0]  %s30, 2048, %s32, [#allocation6], 128, 128, 8
    $region9: #{tpu_custom_call.1} parent=1 // pred_fallthru
      _
    // Predicated region
    $region10: #{tpu_custom_call.1} parent=1 // pred_check
      _
    $region11: #{tpu_custom_call.1} parent=1 // pred_check_branch
      %39 = sbr.rel (0) target = $region13
    $region12: #{tpu_custom_call.1} parent=1 // pred_region
      %41 = vsyncadd [#allocation6], 0
      %s42 = sshll.u32 %s2, 4
      %s43 = int_to_ptr.hbm [resolvable:$true] %s42
      %s44 = sshll.u32 [#allocation7], 4
      %s45 = int_to_ptr.vmem [resolvable:$true] %s44
      %50 = dma.hbm_to_vmem [thread:$0]  %s43, 2048, %s45, [#allocation6], 128, 128, 8
    $region13: #{tpu_custom_call.1} parent=1 // pred_fallthru
      _
    // Predicated region
    $region14: #{tpu_custom_call.1} parent=1 // pred_check
      _
    $region15: #{tpu_custom_call.1} parent=1 // pred_check_branch
      %52 = sbr.rel (0) target = $region17
    $region16: #{tpu_custom_call.1} parent=1 // pred_region
      _
    $region17: #{tpu_custom_call.1} parent=1 // pred_fallthru
      _
    // Predicated region
    $region18: #{tpu_custom_call.1} parent=1 // pred_check
      _
    $region19: #{tpu_custom_call.1} parent=1 // pred_check_branch
      %54 = sbr.rel (0) target = $region21
    $region20: #{tpu_custom_call.1} parent=1 // pred_region
      _
    $region21: #{tpu_custom_call.1} parent=1 // pred_fallthru
      _
    // Predicated region
    $region22: #{tpu_custom_call.1} parent=1 // pred_check
      _
    $region23: #{tpu_custom_call.1} parent=1 // pred_check_branch
      %56 = sbr.rel (0) target = $region25
    $region24: #{tpu_custom_call.1} parent=1 // pred_region
      _
    $region25: #{tpu_custom_call.1} parent=1 // pred_fallthru
      _
    // Predicated region
    $region26: #{tpu_custom_call.1} parent=1 // pred_check
      _
    $region27: #{tpu_custom_call.1} parent=1 // pred_check_branch
      %58 = sbr.rel (0) target = $region29
    $region28: #{tpu_custom_call.1} parent=1 // pred_region
      %60 = dma.done [#allocation3], 128
    $region29: #{tpu_custom_call.1} parent=1 // pred_fallthru
      _
    // Predicated region
    $region30: #{tpu_custom_call.1} parent=1 // pred_check
      _
    $region31: #{tpu_custom_call.1} parent=1 // pred_check_branch
      %62 = sbr.rel (0) target = $region33
    $region32: #{tpu_custom_call.1} parent=1 // pred_region
      %64 = dma.done [#allocation6], 2048
    $region33: #{tpu_custom_call.1} parent=1 // pred_fallthru
      _
    // Predicated region
    $region34: #{tpu_custom_call.1} parent=1 // pred_check
      _
    $region35: #{tpu_custom_call.1} parent=1 // pred_check_branch
      %66 = sbr.rel (0) target = $region37
    $region36: #{tpu_custom_call.1} parent=1 // pred_region
      %68 = dma.done [#allocation6], 2048
    $region37: #{tpu_custom_call.1} parent=1 // pred_fallthru
      _
    %p69 = scmp.eq.s32.totalorder 0, 0
    // Predicated region
    $region38: #{tpu_custom_call.1} parent=1 // pred_check
      %p70 = pneg %p69
    $region39: #{tpu_custom_call.1} parent=1 // pred_check_branch
      %72 = sbr.rel (%p70) target = $region41
    $region40: #{tpu_custom_call.1} parent=1 // pred_region
      %73 = vst [vmem:[#allocation8] sm:$0xff] 0.0
    $region41: #{tpu_custom_call.1} parent=1 // pred_fallthru
      _
    %v74 = vld [vmem:[#allocation2] sm:$0xff]
    %v75 = vld [vmem:[#allocation5] sm:$0xff]
    %v76 = vld [vmem:[#allocation5 + $0x8] sm:$0xff]
    %v77 = vld [vmem:[#allocation5 + $0x10] sm:$0xff]
    %v78 = vld [vmem:[#allocation5 + $0x18] sm:$0xff]
    %v79 = vld [vmem:[#allocation5 + $0x20] sm:$0xff]
    %v80 = vld [vmem:[#allocation5 + $0x28] sm:$0xff]
    %v81 = vld [vmem:[#allocation5 + $0x30] sm:$0xff]
    %v82 = vld [vmem:[#allocation5 + $0x38] sm:$0xff]
    %v83 = vld [vmem:[#allocation5 + $0x40] sm:$0xff]
    %v84 = vld [vmem:[#allocation5 + $0x48] sm:$0xff]
    %v85 = vld [vmem:[#allocation5 + $0x50] sm:$0xff]
    %v86 = vld [vmem:[#allocation5 + $0x58] sm:$0xff]
    %v87 = vld [vmem:[#allocation5 + $0x60] sm:$0xff]
    %v88 = vld [vmem:[#allocation5 + $0x68] sm:$0xff]
    %v89 = vld [vmem:[#allocation5 + $0x70] sm:$0xff]
    %v90 = vld [vmem:[#allocation5 + $0x78] sm:$0xff]
    %v91 = vld [vmem:[%s3] sm:$0x1]
    %v93 = vperm.slane %v91, 0
    %v95 = vmul.f32 %v74, %v93
    %v96 = vld [vmem:[#allocation7] sm:$0xff]
    %v97 = vld [vmem:[#allocation7 + $0x8] sm:$0xff]
    %v98 = vld [vmem:[#allocation7 + $0x10] sm:$0xff]
    %v99 = vld [vmem:[#allocation7 + $0x18] sm:$0xff]
    %v100 = vld [vmem:[#allocation7 + $0x20] sm:$0xff]
    %v101 = vld [vmem:[#allocation7 + $0x28] sm:$0xff]
    %v102 = vld [vmem:[#allocation7 + $0x30] sm:$0xff]
    %v103 = vld [vmem:[#allocation7 + $0x38] sm:$0xff]
    %v104 = vld [vmem:[#allocation7 + $0x40] sm:$0xff]
    %v105 = vld [vmem:[#allocation7 + $0x48] sm:$0xff]
    %v106 = vld [vmem:[#allocation7 + $0x50] sm:$0xff]
    %v107 = vld [vmem:[#allocation7 + $0x58] sm:$0xff]
    %v108 = vld [vmem:[#allocation7 + $0x60] sm:$0xff]
    %v109 = vld [vmem:[#allocation7 + $0x68] sm:$0xff]
    %v110 = vld [vmem:[#allocation7 + $0x70] sm:$0xff]
    %v111 = vld [vmem:[#allocation7 + $0x78] sm:$0xff]
    %112 = vmatpush.msra.mxu0 %v111
    %113 = vmatpush.msra.mxu0 %v110
    %114 = vmatpush.msra.mxu0 %v109
    %115 = vmatpush.msra.mxu0 %v108
    %116 = vmatpush.msra.mxu0 %v107
    %117 = vmatpush.msra.mxu0 %v106
    %118 = vmatpush.msra.mxu0 %v105
    %119 = vmatpush.msra.mxu0 %v104
    %120 = vmatpush.msra.mxu0 %v103
    %121 = vmatpush.msra.mxu0 %v102
    %122 = vmatpush.msra.mxu0 %v101
    %123 = vmatpush.msra.mxu0 %v100
    %124 = vmatpush.msra.mxu0 %v99
    %125 = vmatpush.msra.mxu0 %v98
    %126 = vmatpush.msra.mxu0 %v97
    %127 = vmatpush.msra.mxu0 %v96
    %128 = vmatmul.f32.gmra.mxu0 %v95
    %v129 = vpop.f32.mrf.mxu0
    %v130 = vadd.f32 0.0, %v129
    %131 = vdwg.mxu0
    %v132 = vld [vmem:[#allocation8] sm:$0xff]
    %v133 = vld [vmem:[%s4] sm:$0x1]
    %v135 = vperm.slane %v133, 0
    %v137 = vmul.f32 %v130, %v135
    %138 = vmatpush.msra.mxu0 %v90
    %139 = vmatpush.msra.mxu0 %v89
    %140 = vmatpush.msra.mxu0 %v88
    %141 = vmatpush.msra.mxu0 %v87
    %142 = vmatpush.msra.mxu0 %v86
    %143 = vmatpush.msra.mxu0 %v85
    %144 = vmatpush.msra.mxu0 %v84
    %145 = vmatpush.msra.mxu0 %v83
    %146 = vmatpush.msra.mxu0 %v82
    %147 = vmatpush.msra.mxu0 %v81
    %148 = vmatpush.msra.mxu0 %v80
    %149 = vmatpush.msra.mxu0 %v79
    %150 = vmatpush.msra.mxu0 %v78
    %151 = vmatpush.msra.mxu0 %v77
    %152 = vmatpush.msra.mxu0 %v76
    %153 = vmatpush.msra.mxu0 %v75
    %154 = vmatmul.f32.gmra.mxu0 %v74
    %v155 = vpop.f32.mrf.mxu0
    %v156 = vadd.f32 %v137, %v155
    %157 = vdwg.mxu0
    %v158 = vadd.f32 %v132, %v156
    %159 = vst [vmem:[#allocation8] sm:$0xff] %v158
    // Predicated region
    $region42: #{tpu_custom_call.1} parent=1 // pred_check
      %p160 = pneg %p69
    $region43: #{tpu_custom_call.1} parent=1 // pred_check_branch
      %162 = sbr.rel (%p160) target = $region45
    $region44: #{tpu_custom_call.1} parent=1 // pred_region
      %v163 = vld [vmem:[#allocation8] sm:$0xff]
      %v164 = vld [vmem:[%s5] sm:$0x1]
      %v166 = vperm.slane %v164, 0
      %v168 = vadd.f32 %v163, %v166
      %169 = vst [vmem:[#allocation8] sm:$0xff] %v168
    $region45: #{tpu_custom_call.1} parent=1 // pred_fallthru
      _
    // Predicated region
    $region46: #{tpu_custom_call.1} parent=1 // pred_check
      _
    $region47: #{tpu_custom_call.1} parent=1 // pred_check_branch
      %171 = sbr.rel (0) target = $region49
    $region48: #{tpu_custom_call.1} parent=1 // pred_region
      %173 = vsyncadd [#allocation4], 0
      %s175 = sshll.u32 [#allocation8], 4
      %s176 = int_to_ptr.vmem [resolvable:$true] %s175
      %s177 = sshll.u32 %s6, 4
      %s178 = int_to_ptr.hbm [resolvable:$true] %s177
      %180 = dma.vmem_to_hbm [thread:$0]  %s176, 128, %s178, [#allocation4]
    $region49: #{tpu_custom_call.1} parent=1 // pred_fallthru
      _
    // Predicated region
    $region50: #{tpu_custom_call.1} parent=1 // pred_check
      _
    $region51: #{tpu_custom_call.1} parent=1 // pred_check_branch
      %182 = sbr.rel (0) target = $region53
    $region52: #{tpu_custom_call.1} parent=1 // pred_region
      %184 = dma.done [#allocation4], 128
    $region53: #{tpu_custom_call.1} parent=1 // pred_fallthru
      _
    %185 = vsyncpa [#allocation3], 1
    %186 = vsyncpa [#allocation6], 1
    %187 = vsyncpa [#allocation4], 1

</llo_original>
